<compile_context>
chip_gen: v6e
topology: v6e:2x2x1
jax: 0.10.0
libtpu: 0.0.40
codegen_flags: <defaults>
</compile_context>

<pallas_src>
import jax
import jax.numpy as jnp
from jax.experimental import pallas as pl
from jax.experimental.pallas import tpu as pltpu


def _copy_kernel(x_ref, o_ref):
    # Pure VMEM tile copy; HBM<->VMEM DMA is handled by the BlockSpec pipeline.
    o_ref[...] = x_ref[...]


def _lane_dense_2d(total, last_dim):
    """Pick a (rows, lanes) factorization with lanes a large multiple of 128."""
    for k in (2048, 1024, 512, 256, 128):
        if total % k == 0:
            return total // k, k, True
    # Fallback: keep the original last dim (block last dim == full dim is legal).
    ld = max(last_dim, 1)
    return total // ld, ld, False


def _choose_row_tile(m, k, itemsize, target_bytes=2 << 20):
    """~2 MiB row tiles, multiple of 8 rows; full extent if the tensor is small."""
    if m <= 8:
        return m
    tm = (target_bytes // max(k * itemsize, 1)) // 8 * 8
    tm = max(8, tm)
    if tm >= m:
        return m
    return tm


def _pallas_copy(x):
    """Materialize a copy of `x` via a lane-dense, row-tiled Pallas copy kernel."""
    orig_shape = x.shape
    dtype = x.dtype
    itemsize = jnp.dtype(dtype).itemsize
    total = int(x.size)

    if total == 0:
        # Nothing to copy; avoid a zero-size pallas_call.
        return x

    last_dim = int(orig_shape[-1]) if x.ndim >= 1 else 1
    m, k, _lane_dense = _lane_dense_2d(total, last_dim)
    flat = x.reshape(m, k)

    # Row tiling works in both layouts:
    #   lane-dense:  block (tm, k) with k a multiple of 128  -> legal
    #   fallback:    block (tm, k) with k == full array dim  -> legal
    # (tm is a multiple of 8, or equals m when m <= 8.)
    tm = _choose_row_tile(m, k, itemsize)

    grid = (pl.cdiv(m, tm),)
    tile_bytes = tm * k * itemsize
    # in + out tiles, double-buffered, plus slack; stay well under v7x's 64 MiB.
    vmem_limit = min(int(4 * tile_bytes + (4 << 20)), 32 << 20)

    out = pl.pallas_call(
        _copy_kernel,
        out_shape=jax.ShapeDtypeStruct((m, k), dtype),
        grid=grid,
        in_specs=[pl.BlockSpec((tm, k), lambda i: (i, 0))],
        out_specs=pl.BlockSpec((tm, k), lambda i: (i, 0)),
        compiler_params=pltpu.CompilerParams(
            dimension_semantics=("parallel",),
            vmem_limit_bytes=vmem_limit,
        ),
    )(flat)

    return out.reshape(orig_shape)


def fixed_input_choice(optional_inputs, mask, *, materialize_copy=True):
    """JAX/Pallas equivalent of FixedInputChoice(mask).forward(optional_inputs).

    `mask` is a Python list; selection happens at trace time, so only the
    selected tensor is ever touched. If `materialize_copy` is False this
    returns the selected tensor directly (zero data movement), matching
    PyTorch's aliasing semantics exactly.
    """
    mask_len = len(mask)
    selected = None
    for i in range(mask_len):
        if mask[i]:
            selected = i
            break
    if selected is None:
        # PyTorch would raise AttributeError in forward (self.selected never set).
        raise ValueError("FixedInputChoice: mask has no truthy entry")

    if len(optional_inputs) != mask_len:
        # PyTorch module implicitly returns None in this case.
        return None

    chosen = optional_inputs[selected]
    if not materialize_copy:
        return chosen
    return _pallas_copy(chosen)


if __name__ == "__main__":
    key = jax.random.PRNGKey(0)
    num_choices = 3
    mask = [False, True, False]  # -> selected = 1

    shape = (2, 4, 16, 16)  # NCHW
    keys = jax.random.split(key, num_choices)
    optional_inputs = [
        jax.random.normal(keys[i], shape, dtype=jnp.float32)
        for i in range(num_choices)
    ]

    result = fixed_input_choice(optional_inputs, mask)
    result = jax.block_until_ready(result)

    expected = optional_inputs[1]
    assert result.shape == expected.shape
    assert result.dtype == expected.dtype
    assert bool(jnp.all(result == expected))

    # Length-mismatch path returns None, matching the PyTorch module.
    assert fixed_input_choice(optional_inputs[:2], mask) is None

    # Aliasing (no-copy) path matches too.
    aliased = fixed_input_choice(optional_inputs, mask, materialize_copy=False)
    assert aliased is optional_inputs[1]

    print("KERNEL_OK")
</pallas_src>

<mosaic_0001>
module attributes {stable_mosaic.version = 11 : i64} {
  func.func @_copy_kernel(%arg0: i32, %arg1: memref<1x2048xf32, #tpu.memory_space<vmem>>, %arg2: memref<1x2048xf32, #tpu.memory_space<vmem>>) attributes {dimension_semantics = [#tpu.dimension_semantics<parallel>], iteration_bounds = array<i64: 1>, scalar_prefetch = 0 : i64, scratch_operands = 0 : i64, tpu.core_type = #tpu.core_type<tc>, window_params = [{transform_indices = @transform_0, window_bounds = array<i64: 1, 2048>}, {transform_indices = @transform_1, window_bounds = array<i64: 1, 2048>}]} {
    %c0 = arith.constant 0 : index
    %c0_0 = arith.constant 0 : index
    %0 = vector.load %arg1[%c0, %c0_0] : memref<1x2048xf32, #tpu.memory_space<vmem>>, vector<1x2048xf32>
    %c0_1 = arith.constant 0 : index
    %c0_2 = arith.constant 0 : index
    %1 = vector.load %arg2[%c0_1, %c0_2] : memref<1x2048xf32, #tpu.memory_space<vmem>>, vector<1x2048xf32>
    tpu.vector_store %arg2[%c0_1, %c0_2], %0 {strides = array<i32>} : memref<1x2048xf32, #tpu.memory_space<vmem>>, vector<1x2048xf32>,
    return
  }
  func.func @transform_0(%arg0: i32) -> (i32, i32) {
    %c0_i32 = arith.constant 0 : i32
    %c0_i32_0 = arith.constant 0 : i32
    return %arg0, %c0_i32 : i32, i32
  }
  func.func @transform_1(%arg0: i32) -> (i32, i32) {
    %c0_i32 = arith.constant 0 : i32
    %c0_i32_0 = arith.constant 0 : i32
    return %arg0, %c0_i32 : i32, i32
  }
}

</mosaic_0001>

<llo_original>
// kernel: tpu_custom_call.1
$region0: #{tpu_custom_call.1}
  #allocation0 [shape = 'u32[]', space=smem, size = 0x4, offset = 0x4, fixed_abs, tag = 'smem constant byte address 0x4 - core index']
  #allocation1 [shape = 'u32[144,128]{1,0:T(1,128)}', space=vmem, size = 0x12000, scoped, tag = 'internal scratch']
  %s0 = inlined_call_operand.hbm [shape: f32[1,2048], index: 0, kind: input, shape index: {}]
  %s1 = inlined_call_operand.hbm [shape: f32[1,2048], index: 1, kind: output, shape index: {}]
  %s2 = sld [smem:[#allocation0]]
  $region18: #{tpu_custom_call.1} parent=0
    _
  %s4 = ssub.s32 1, %s2
  %s5 = scalar_select 0, %s4, %s2
  $region1: #{tpu_custom_call.1} parent=0
    #allocation2 [shape = 'u8[8192]{0}', space=vmem, size = 0x2000, scoped, tag = 'input window, operand 0, single buffered']
    #allocation3 [shape = 's32[1]{0}', space=sflag, size = 0x4, scoped, tag = 'scoped memory for tpu_custom_call.1']
    #allocation4 [shape = 's32[1]{0}', space=sflag, size = 0x4, scoped, tag = 'scoped memory for tpu_custom_call.1']
    #allocation5 [shape = 'u8[8192]{0}', space=vmem, size = 0x2000, scoped, tag = 'output window, operand 0, single buffered']
    %6 = vsyncpa [#allocation3], 0
    %7 = vsyncpa [#allocation4], 0
    // Predicated region
    $region2: #{tpu_custom_call.1} parent=1 // pred_check
      _
    $region3: #{tpu_custom_call.1} parent=1 // pred_check_branch
      %9 = sbr.rel (0) target = $region5
    $region4: #{tpu_custom_call.1} parent=1 // pred_region
      %s11 = ssub.s32 256, 256
      %12 = vsyncadd [#allocation3], %s11
      %s14 = sshll.u32 [#allocation2], 4
      %s15 = int_to_ptr.vmem [resolvable:$true] %s14
      %17 = dma.hbm_to_vmem [thread:$0]  %s0, 256, %s15, [#allocation3]
    $region5: #{tpu_custom_call.1} parent=1 // pred_fallthru
      _
    // Predicated region
    $region6: #{tpu_custom_call.1} parent=1 // pred_check
      _
    $region7: #{tpu_custom_call.1} parent=1 // pred_check_branch
      %19 = sbr.rel (0) target = $region9
    $region8: #{tpu_custom_call.1} parent=1 // pred_region
      %20 = dma.done [#allocation3], 256
    $region9: #{tpu_custom_call.1} parent=1 // pred_fallthru
      _
    %v21 = vld [vmem:[#allocation2] sm:$0xff]
    %v22 = vld [vmem:[#allocation2 + $0x8] sm:$0xff]
    %23 = vst [vmem:[#allocation5] sm:$0xff] %v21
    %24 = vst [vmem:[#allocation5 + $0x8] sm:$0xff] %v22
    // Predicated region
    $region10: #{tpu_custom_call.1} parent=1 // pred_check
      _
    $region11: #{tpu_custom_call.1} parent=1 // pred_check_branch
      %26 = sbr.rel (0) target = $region13
    $region12: #{tpu_custom_call.1} parent=1 // pred_region
      %s28 = ssub.s32 256, 256
      %29 = vsyncadd [#allocation4], %s28
      %s31 = sshll.u32 [#allocation5], 4
      %s32 = int_to_ptr.vmem [resolvable:$true] %s31
      %34 = dma.vmem_to_hbm [thread:$0]  %s32, 256, %s1, [#allocation4]
    $region13: #{tpu_custom_call.1} parent=1 // pred_fallthru
      _
    // Predicated region
    $region14: #{tpu_custom_call.1} parent=1 // pred_check
      _
    $region15: #{tpu_custom_call.1} parent=1 // pred_check_branch
      %36 = sbr.rel (0) target = $region17
    $region16: #{tpu_custom_call.1} parent=1 // pred_region
      %37 = dma.done [#allocation4], 256
    $region17: #{tpu_custom_call.1} parent=1 // pred_fallthru
      _
    %38 = vsyncpa [#allocation3], 1
    %39 = vsyncpa [#allocation4], 1

</llo_original>
